<compile_context>
chip_gen: v5e
topology: v5e:2x2
jax: 0.10.0
libtpu: 0.0.40
codegen_flags: <defaults>
</compile_context>

<pallas_src>
import functools

import jax
import jax.numpy as jnp
from jax.experimental import pallas as pl
from jax.experimental.pallas import tpu as pltpu


_INV255 = float(1.0 / 255.0)


def _unpack_kernel(x_ref, o_ref, *, num_channels):
    """Lane-dense byte unpack + normalize.

    x_ref: (1, TR, LANE) int32 block; each word packs 4 uint8 channel bytes
           (channel 0 = least-significant byte, little-endian).
    o_ref: (1, C, TR, LANE) float32 block.
    """
    word = x_ref[...]
    inv255 = jnp.float32(_INV255)
    for c in range(num_channels):          # static, tiny loop (<=4)
        if c == 0:
            byte = word & jnp.int32(0xFF)
        else:
            # Arithmetic shift is fine: the 0xFF mask strips any sign bits.
            byte = (word >> jnp.int32(8 * c)) & jnp.int32(0xFF)
        o_ref[:, c, :, :] = byte.astype(jnp.float32) * inv255


def _transpose_kernel(x_ref, o_ref):
    # Generic fallback (non-uint8 dtype or C > 4): in-kernel permute.
    x = x_ref[...].astype(jnp.float32) * jnp.float32(_INV255)
    o_ref[...] = jnp.transpose(x, (0, 3, 1, 2))


def _pick_row_tile(num_rows, max_rows=1024):
    """Largest divisor of num_rows that is a multiple of 8 and <= max_rows."""
    for tr in range(min(num_rows, max_rows), 7, -1):
        if tr % 8 == 0 and num_rows % tr == 0:
            return tr
    return num_rows  # full extent is always a legal block dim


def preprocess(x):
    """Pallas equivalent of PreProcess.forward.

    Args:
      x: array of shape (B, W, H, C).
    Returns:
      float32 array of shape (B, C, W, H), values = x / 255.
    """
    B, W, H, C = x.shape
    N = W * H

    if x.dtype == jnp.uint8 and 1 <= C <= 4:
        # ---------- fast, lane-dense path ----------
        xp = x if C == 4 else jnp.pad(x, ((0, 0), (0, 0), (0, 0), (0, 4 - C)))
        # 4 x uint8 -> 1 x int32 word; byte 0 (channel 0) is the LSB.
        words = jax.lax.bitcast_convert_type(xp, jnp.int32)        # (B, W, H)
        if N % 128 == 0:
            lane, rows = 128, N // 128
        else:
            lane, rows = N, 1
        words = words.reshape(B, rows, lane)
        tr = _pick_row_tile(rows)
        grid = (B, rows // tr)

        out = pl.pallas_call(
            functools.partial(_unpack_kernel, num_channels=C),
            out_shape=jax.ShapeDtypeStruct((B, C, rows, lane), jnp.float32),
            grid_spec=pltpu.PrefetchScalarGridSpec(
                num_scalar_prefetch=0,
                grid=grid,
                in_specs=[
                    pl.BlockSpec((1, tr, lane), lambda b, t: (b, t, 0)),
                ],
                out_specs=pl.BlockSpec(
                    (1, C, tr, lane), lambda b, t: (b, 0, t, 0)
                ),
            ),
            compiler_params=pltpu.CompilerParams(
                dimension_semantics=("parallel", "parallel"),
            ),
        )(words)
        return out.reshape(B, C, W, H)

    # ---------- generic fallback ----------
    # TODO(synk): lane-dense de-interleave for non-uint8 / C>4 inputs; this
    # path keeps the in-kernel permute (correct, but layout/XLU bound).
    return pl.pallas_call(
        _transpose_kernel,
        out_shape=jax.ShapeDtypeStruct((B, C, W, H), jnp.float32),
        grid_spec=pltpu.PrefetchScalarGridSpec(
            num_scalar_prefetch=0,
            grid=(B,),
            in_specs=[pl.BlockSpec((1, W, H, C), lambda b: (b, 0, 0, 0))],
            out_specs=pl.BlockSpec((1, C, W, H), lambda b: (b, 0, 0, 0)),
        ),
        compiler_params=pltpu.CompilerParams(
            dimension_semantics=("parallel",),
        ),
    )(x)


if __name__ == "__main__":
    key = jax.random.PRNGKey(0)
    B, W, H, C = 2, 16, 16, 4
    # Deterministic synthetic "image" input, uint8 like a real image tensor.
    x = jax.random.randint(key, (B, W, H, C), 0, 256, dtype=jnp.int32).astype(
        jnp.uint8
    )

    out = jax.block_until_ready(preprocess(x))
    ref = jnp.transpose(x, (0, 3, 1, 2)).astype(jnp.float32) / 255.0
    assert out.shape == (B, C, W, H)
    assert out.dtype == jnp.float32
    assert jnp.allclose(out, ref, atol=1e-6), "uint8 C=4 mismatch vs reference"

    # Also exercise the padded C=3 (RGB) fast path.
    x3 = x[..., :3]
    out3 = jax.block_until_ready(preprocess(x3))
    ref3 = jnp.transpose(x3, (0, 3, 1, 2)).astype(jnp.float32) / 255.0
    assert out3.shape == (B, 3, W, H)
    assert jnp.allclose(out3, ref3, atol=1e-6), "uint8 C=3 mismatch vs reference"

    print("KERNEL_OK")
</pallas_src>

<mosaic_0001>
module attributes {stable_mosaic.version = 11 : i64} {
  func.func @_unpack_kernel(%arg0: i32, %arg1: i32, %arg2: memref<1x2x128xi32, #tpu.memory_space<vmem>>, %arg3: memref<1x4x2x128xf32, #tpu.memory_space<vmem>>) attributes {dimension_semantics = [#tpu.dimension_semantics<parallel>, #tpu.dimension_semantics<parallel>], iteration_bounds = array<i64: 2, 1>, scalar_prefetch = 0 : i64, scratch_operands = 0 : i64, tpu.core_type = #tpu.core_type<tc>, window_params = [{transform_indices = @transform_0, window_bounds = array<i64: 1, 2, 128>}, {transform_indices = @transform_1, window_bounds = array<i64: 1, 4, 2, 128>}]} {
    %c0 = arith.constant 0 : index
    %c0_0 = arith.constant 0 : index
    %c0_1 = arith.constant 0 : index
    %0 = vector.load %arg2[%c0, %c0_0, %c0_1] : memref<1x2x128xi32, #tpu.memory_space<vmem>>, vector<1x2x128xi32>
    %c255_i32 = arith.constant 255 : i32
    %1 = vector.broadcast %c255_i32 : i32 to vector<1x2x128xi32>
    %2 = arith.andi %0, %1 : vector<1x2x128xi32>
    %3 = arith.sitofp %2 : vector<1x2x128xi32> to vector<1x2x128xf32>
    %cst = arith.constant 0.00392156886 : f32
    %4 = vector.broadcast %cst : f32 to vector<1x2x128xf32>
    %5 = arith.mulf %3, %4 : vector<1x2x128xf32>
    %c0_2 = arith.constant 0 : index
    %c0_3 = arith.constant 0 : index
    %c0_4 = arith.constant 0 : index
    %c0_5 = arith.constant 0 : index
    %6 = vector.load %arg3[%c0_2, %c0_3, %c0_4, %c0_5] : memref<1x4x2x128xf32, #tpu.memory_space<vmem>>, vector<1x1x2x128xf32>
    %7 = vector.shape_cast %6 : vector<1x1x2x128xf32> to vector<1x2x128xf32>
    %8 = vector.shape_cast %5 : vector<1x2x128xf32> to vector<1x1x2x128xf32>
    tpu.vector_store %arg3[%c0_2, %c0_3, %c0_4, %c0_5], %8 {strides = array<i32>} : memref<1x4x2x128xf32, #tpu.memory_space<vmem>>, vector<1x1x2x128xf32>,
    %c8_i32 = arith.constant 8 : i32
    %9 = vector.broadcast %c8_i32 : i32 to vector<1x2x128xi32>
    %10 = arith.shrsi %0, %9 : vector<1x2x128xi32>
    %c255_i32_6 = arith.constant 255 : i32
    %11 = vector.broadcast %c255_i32_6 : i32 to vector<1x2x128xi32>
    %12 = arith.andi %10, %11 : vector<1x2x128xi32>
    %13 = arith.sitofp %12 : vector<1x2x128xi32> to vector<1x2x128xf32>
    %cst_7 = arith.constant 0.00392156886 : f32
    %14 = vector.broadcast %cst_7 : f32 to vector<1x2x128xf32>
    %15 = arith.mulf %13, %14 : vector<1x2x128xf32>
    %c0_8 = arith.constant 0 : index
    %c1 = arith.constant 1 : index
    %c0_9 = arith.constant 0 : index
    %c0_10 = arith.constant 0 : index
    %16 = vector.load %arg3[%c0_8, %c1, %c0_9, %c0_10] : memref<1x4x2x128xf32, #tpu.memory_space<vmem>>, vector<1x1x2x128xf32>
    %17 = vector.shape_cast %16 : vector<1x1x2x128xf32> to vector<1x2x128xf32>
    %18 = vector.shape_cast %15 : vector<1x2x128xf32> to vector<1x1x2x128xf32>
    tpu.vector_store %arg3[%c0_8, %c1, %c0_9, %c0_10], %18 {strides = array<i32>} : memref<1x4x2x128xf32, #tpu.memory_space<vmem>>, vector<1x1x2x128xf32>,
    %c16_i32 = arith.constant 16 : i32
    %19 = vector.broadcast %c16_i32 : i32 to vector<1x2x128xi32>
    %20 = arith.shrsi %0, %19 : vector<1x2x128xi32>
    %c255_i32_11 = arith.constant 255 : i32
    %21 = vector.broadcast %c255_i32_11 : i32 to vector<1x2x128xi32>
    %22 = arith.andi %20, %21 : vector<1x2x128xi32>
    %23 = arith.sitofp %22 : vector<1x2x128xi32> to vector<1x2x128xf32>
    %cst_12 = arith.constant 0.00392156886 : f32
    %24 = vector.broadcast %cst_12 : f32 to vector<1x2x128xf32>
    %25 = arith.mulf %23, %24 : vector<1x2x128xf32>
    %c0_13 = arith.constant 0 : index
    %c2 = arith.constant 2 : index
    %c0_14 = arith.constant 0 : index
    %c0_15 = arith.constant 0 : index
    %26 = vector.load %arg3[%c0_13, %c2, %c0_14, %c0_15] : memref<1x4x2x128xf32, #tpu.memory_space<vmem>>, vector<1x1x2x128xf32>
    %27 = vector.shape_cast %26 : vector<1x1x2x128xf32> to vector<1x2x128xf32>
    %28 = vector.shape_cast %25 : vector<1x2x128xf32> to vector<1x1x2x128xf32>
    tpu.vector_store %arg3[%c0_13, %c2, %c0_14, %c0_15], %28 {strides = array<i32>} : memref<1x4x2x128xf32, #tpu.memory_space<vmem>>, vector<1x1x2x128xf32>,
    %c24_i32 = arith.constant 24 : i32
    %29 = vector.broadcast %c24_i32 : i32 to vector<1x2x128xi32>
    %30 = arith.shrsi %0, %29 : vector<1x2x128xi32>
    %c255_i32_16 = arith.constant 255 : i32
    %31 = vector.broadcast %c255_i32_16 : i32 to vector<1x2x128xi32>
    %32 = arith.andi %30, %31 : vector<1x2x128xi32>
    %33 = arith.sitofp %32 : vector<1x2x128xi32> to vector<1x2x128xf32>
    %cst_17 = arith.constant 0.00392156886 : f32
    %34 = vector.broadcast %cst_17 : f32 to vector<1x2x128xf32>
    %35 = arith.mulf %33, %34 : vector<1x2x128xf32>
    %c0_18 = arith.constant 0 : index
    %c3 = arith.constant 3 : index
    %c0_19 = arith.constant 0 : index
    %c0_20 = arith.constant 0 : index
    %36 = vector.load %arg3[%c0_18, %c3, %c0_19, %c0_20] : memref<1x4x2x128xf32, #tpu.memory_space<vmem>>, vector<1x1x2x128xf32>
    %37 = vector.shape_cast %36 : vector<1x1x2x128xf32> to vector<1x2x128xf32>
    %38 = vector.shape_cast %35 : vector<1x2x128xf32> to vector<1x1x2x128xf32>
    tpu.vector_store %arg3[%c0_18, %c3, %c0_19, %c0_20], %38 {strides = array<i32>} : memref<1x4x2x128xf32, #tpu.memory_space<vmem>>, vector<1x1x2x128xf32>,
    return
  }
  func.func @transform_0(%arg0: i32, %arg1: i32) -> (i32, i32, i32) {
    %c0_i32 = arith.constant 0 : i32
    %c0_i32_0 = arith.constant 0 : i32
    return %arg0, %arg1, %c0_i32 : i32, i32, i32
  }
  func.func @transform_1(%arg0: i32, %arg1: i32) -> (i32, i32, i32, i32) {
    %c0_i32 = arith.constant 0 : i32
    %c0_i32_0 = arith.constant 0 : i32
    %c0_i32_1 = arith.constant 0 : i32
    return %arg0, %c0_i32, %arg1, %c0_i32_0 : i32, i32, i32, i32
  }
}

</mosaic_0001>

<llo_original>
// kernel: tpu_custom_call.1
$region0: #{tpu_custom_call.1}
  #allocation0 [shape = 'u32[]', space=smem, size = 0x4, offset = 0x4, fixed_abs, tag = 'smem constant byte address 0x4 - core index']
  #allocation1 [shape = 'u32[72,128]{1,0:T(1,128)}', space=vmem, size = 0x9000, scoped, tag = 'internal scratch']
  %s0 = inlined_call_operand.hbm [shape: s32[2,2,128], index: 0, kind: input, shape index: {}]
  %s1 = inlined_call_operand.hbm [shape: f32[2,4,2,128], index: 1, kind: output, shape index: {}]
  %s2 = sld [smem:[#allocation0]]
  $region41: #{tpu_custom_call.1} parent=0
    _
  %s4 = ssub.s32 1, %s2
  %s5 = scalar_select 0, %s4, %s2
  $region1: #{tpu_custom_call.1} parent=0
    #allocation2 [shape = 'u8[2048]{0}', space=vmem, size = 0x800, scoped, tag = 'input window, operand 0']
    #allocation3 [shape = 's32[2]{0}', space=sflag, size = 0x8, scoped, tag = 'scoped memory for tpu_custom_call.1']
    #allocation4 [shape = 's32[2]{0}', space=sflag, size = 0x8, scoped, tag = 'scoped memory for tpu_custom_call.1']
    #allocation5 [shape = 'u8[8192]{0}', space=vmem, size = 0x2000, scoped, tag = 'output window, operand 0']
    %6 = vsyncpa [#allocation3], 0
    %s7 = scalar_lea.sflag [#allocation3], 1
    %8 = vsyncpa %s7, 0
    %9 = vsyncpa [#allocation4], 0
    %s10 = scalar_lea.sflag [#allocation4], 1
    %11 = vsyncpa %s10, 0
    loop: start=0, step=1, limit=4
    $region2: #{tpu_custom_call.1} parent=1 // loop_pre_header
      _
    $region3: #{tpu_custom_call.1} parent=1 // loop_header
      %s13 = sphi 0, %s17
      %p14 = scmp.ge.s32.totalorder %s13, 4
      %s20 = sphi 0, %s32
      %s21 = sphi 0, %s28
      %s22 = sphi 0, %s20
      %s23 = sphi 0, %s21
      %s24 = sphi 0, %s22
      %s25 = sphi 0, %s23
      %s37 = sphi 0, %s39
      %s40 = sphi 0, %s37
      %s41 = sphi 0, %s40
      %s57 = sphi 0, %s41
      %s65 = sphi 0, %s67
      %s68 = sphi 0, %s65
      %s69 = sphi 0, %s68
      %s85 = sphi 0, %s69
    $region4: #{tpu_custom_call.1} parent=1 // loop_header_branch
      %16 = sbr.rel (%p14) target = $region8
    $region5: #{tpu_custom_call.1} parent=1 // loop_body
      %s18 = ssub.s32 %s13, 1
      %s19 = ssub.s32 %s13, 2
      %s26 = sadd.s32 1, %s21
      %p27 = scmp.ge.s32.totalorder %s26, 1
      %s28 = scalar_select %p27, 0, %s26
      %s29 = sadd.s32 1, %s20
      %s30 = scalar_select %p27, %s29, %s20
      %p31 = scmp.ge.s32.totalorder %s30, 2
      %s32 = scalar_select %p31, 0, %s30
      %s33 = ssub.s32 %s20, %s32
      %s34 = ssub.s32 %s21, %s28
      %s35 = sor.u32 %s33, %s34
      %p36 = scmp.eq.s32.totalorder %s35, 0
      %s38 = sadd.s32 %s37, 1
      %s39 = scalar_select %p36, %s37, %s38
      %p42 = pneg %p36
      %p43 = scmp.eq.s32.totalorder %s13, 1
      %p44 = por %p42, %p43
      %p45 = scmp.ne.s32.totalorder %s37, %s40
      %p46 = scmp.eq.s32.totalorder %s13, 0
      %p47 = por %p45, %p46
      %p48 = scmp.ne.s32.totalorder %s37, %s40
      %p49 = scmp.eq.s32.totalorder %s18, 1
      %p50 = por %p48, %p49
      %p51 = scmp.ne.s32.totalorder %s40, %s41
      %p52 = scmp.eq.s32.totalorder %s18, 0
      %p53 = por %p51, %p52
      %p54 = scmp.ne.s32.totalorder %s40, %s41
      %p55 = scmp.eq.s32.totalorder %s19, 1
      %p56 = por %p54, %p55
      %p58 = scmp.ne.s32.totalorder %s41, %s57
      %p59 = scmp.eq.s32.totalorder %s19, 0
      %p60 = por %p58, %p59
      %s61 = ssub.s32 %s20, %s32
      %s62 = ssub.s32 %s21, %s28
      %s63 = sor.u32 %s61, %s62
      %p64 = scmp.eq.s32.totalorder %s63, 0
      %s66 = sadd.s32 %s65, 1
      %s67 = scalar_select %p64, %s65, %s66
      %p70 = pneg %p64
      %p71 = scmp.eq.s32.totalorder %s13, 1
      %p72 = por %p70, %p71
      %p73 = scmp.ne.s32.totalorder %s65, %s68
      %p74 = scmp.eq.s32.totalorder %s13, 0
      %p75 = por %p73, %p74
      %p76 = scmp.ne.s32.totalorder %s65, %s68
      %p77 = scmp.eq.s32.totalorder %s18, 1
      %p78 = por %p76, %p77
      %p79 = scmp.ne.s32.totalorder %s68, %s69
      %p80 = scmp.eq.s32.totalorder %s18, 0
      %p81 = por %p79, %p80
      %p82 = scmp.ne.s32.totalorder %s68, %s69
      %p83 = scmp.eq.s32.totalorder %s19, 1
      %p84 = por %p82, %p83
      %p86 = scmp.ne.s32.totalorder %s69, %s85
      %p87 = scmp.eq.s32.totalorder %s19, 0
      %p88 = por %p86, %p87
      %p89 = scmp.le.s32.totalorder 1, %s13
      %p90 = scmp.lt.s32.totalorder %s13, 3
      %p91 = pnand %p89, %p90
      %p92 = pneg %p91
      // Predicated region
      $region9: #{tpu_custom_call.1} parent=5 // pred_check
        _
      $region10: #{tpu_custom_call.1} parent=5 // pred_check_branch
        %94 = sbr.rel (%p91) target = $region12
      $region11: #{tpu_custom_call.1} parent=5 // pred_region
        %s95 = ssub.s32 %s13, 1
      $region12: #{tpu_custom_call.1} parent=5 // pred_fallthru
        _
      %p96 = scmp.lt.s32.totalorder %s13, 2
      // Predicated region
      $region13: #{tpu_custom_call.1} parent=5 // pred_check
        %p97 = pneg %p96
      $region14: #{tpu_custom_call.1} parent=5 // pred_check_branch
        %99 = sbr.rel (%p97) target = $region16
      $region15: #{tpu_custom_call.1} parent=5 // pred_region
        // Predicated region
        $region17: #{tpu_custom_call.1} parent=15 // pred_check
          %p100 = pneg %p47
        $region18: #{tpu_custom_call.1} parent=15 // pred_check_branch
          %102 = sbr.rel (%p100) target = $region20
        $region19: #{tpu_custom_call.1} parent=15 // pred_region
          %s103 = sand.u32 %s37, 1
          %s104 = scalar_lea.sflag [#allocation3], %s103
          %s105 = sand.u32 %s37, 1
          %s106 = smul.addr %s105, 2
          %s107 = scalar_lea.vmem [#allocation2], %s106
          %109 = vsyncadd %s104, 0
          %s110 = sadd.s32 %s21, %s20
          %s111 = smul.addr %s110, 2
          %s112 = scalar_lea.hbm %s0, %s111
          %s114 = sshll.u32 %s112, 4
          %s115 = int_to_ptr.hbm [resolvable:$true] %s114
          %s116 = sshll.u32 %s107, 4
          %s117 = int_to_ptr.vmem [resolvable:$true] %s116
          %119 = dma.hbm_to_vmem [thread:$0]  %s115, 32, %s117, %s104
        $region20: #{tpu_custom_call.1} parent=15 // pred_fallthru
          _
      $region16: #{tpu_custom_call.1} parent=5 // pred_fallthru
        _
      %p120 = scmp.le.s32.totalorder 1, %s13
      %p121 = scmp.lt.s32.totalorder %s13, 3
      %p122 = pnand %p120, %p121
      %p123 = pneg %p122
      // Predicated region
      $region21: #{tpu_custom_call.1} parent=5 // pred_check
        _
      $region22: #{tpu_custom_call.1} parent=5 // pred_check_branch
        %125 = sbr.rel (%p122) target = $region24
      $region23: #{tpu_custom_call.1} parent=5 // pred_region
        %s126 = ssub.s32 %s13, 1
        %s127 = sand.u32 %s40, 1
        %s128 = scalar_lea.sflag [#allocation3], %s127
        %s129 = sand.u32 %s40, 1
        %s130 = smul.addr %s129, 2
        %s131 = scalar_lea.vmem [#allocation2], %s130
        // Predicated region
        $region25: #{tpu_custom_call.1} parent=23 // pred_check
          %p132 = pneg %p53
        $region26: #{tpu_custom_call.1} parent=23 // pred_check_branch
          %134 = sbr.rel (%p132) target = $region28
        $region27: #{tpu_custom_call.1} parent=23 // pred_region
          %136 = dma.done %s128, 32
        $region28: #{tpu_custom_call.1} parent=23 // pred_fallthru
          _
        %s137 = sand.u32 %s40, 1
        %s138 = scalar_lea.sflag [#allocation3], %s137
        %s139 = sand.u32 %s40, 1
        %s140 = smul.addr %s139, 2
        %s141 = scalar_lea.vmem [#allocation2], %s140
        %p142 = pneg %p53
        %p143 = pneg %p50
        %p144 = pneg %p81
        %p145 = pneg %p78
        %s146 = sand.u32 %s68, 1
        %s147 = scalar_lea.sflag [#allocation4], %s146
        %s148 = sand.u32 %s68, 1
        %s149 = smul.addr %s148, 8
        %s150 = scalar_lea.vmem [#allocation5], %s149
        %v151 = vld [vmem:[%s131] sm:$0x3]
        %v152 = vand.u32 %v151, 255
        %v153 = vcvt.s32.f32 %v152
        %v154 = vmul.f32 %v153, 0.003921569
        %155 = vst [vmem:[%s150] sm:$0x3] %v154
        %v156 = vshra.s32 %v151, 8
        %v157 = vand.u32 %v156, 255
        %v158 = vcvt.s32.f32 %v157
        %v159 = vmul.f32 %v158, 0.003921569
        %s160 = scalar_lea.vmem %s150, 2 [#allocation5]
        %161 = vst [vmem:[%s160] sm:$0x3] %v159
        %v162 = vshra.s32 %v151, 16
        %v163 = vand.u32 %v162, 255
        %v164 = vcvt.s32.f32 %v163
        %v165 = vmul.f32 %v164, 0.003921569
        %s166 = scalar_lea.vmem %s150, 4 [#allocation5]
        %167 = vst [vmem:[%s166] sm:$0x3] %v165
        %v168 = vshra.s32 %v151, 24
        %v169 = vand.u32 %v168, 255
        %v170 = vcvt.s32.f32 %v169
        %v171 = vmul.f32 %v170, 0.003921569
        %s172 = scalar_lea.vmem %s150, 6 [#allocation5]
        %173 = vst [vmem:[%s172] sm:$0x3] %v171
        %s174 = sand.u32 %s68, 1
        %s175 = scalar_lea.sflag [#allocation4], %s174
        %s176 = sand.u32 %s68, 1
        %s177 = smul.addr %s176, 8
        %s178 = scalar_lea.vmem [#allocation5], %s177
        // Predicated region
        $region29: #{tpu_custom_call.1} parent=23 // pred_check
          %p179 = pneg %p78
        $region30: #{tpu_custom_call.1} parent=23 // pred_check_branch
          %181 = sbr.rel (%p179) target = $region32
        $region31: #{tpu_custom_call.1} parent=23 // pred_region
          %183 = vsyncadd %s175, 0
          %s184 = smul.addr %s22, 4
          %s185 = sadd.s32 %s23, %s184
          %s186 = smul.addr %s185, 2
          %s187 = scalar_lea.hbm %s1, %s186
          %s188 = sshll.u32 %s178, 4
          %s189 = int_to_ptr.vmem [resolvable:$true] %s188
          %s190 = sshll.u32 %s187, 4
          %s191 = int_to_ptr.hbm [resolvable:$true] %s190
          %196 = dma.vmem_to_hbm [thread:$0]  %s189, 128, %s191, %s175, 32, 32, 2
        $region32: #{tpu_custom_call.1} parent=23 // pred_fallthru
          _
      $region24: #{tpu_custom_call.1} parent=5 // pred_fallthru
        _
      %p197 = scmp.le.s32.totalorder 2, %s13
      // Predicated region
      $region33: #{tpu_custom_call.1} parent=5 // pred_check
        %p198 = pneg %p197
      $region34: #{tpu_custom_call.1} parent=5 // pred_check_branch
        %200 = sbr.rel (%p198) target = $region36
      $region35: #{tpu_custom_call.1} parent=5 // pred_region
        %s201 = ssub.s32 %s13, 2
        // Predicated region
        $region37: #{tpu_custom_call.1} parent=35 // pred_check
          %p202 = pneg %p84
        $region38: #{tpu_custom_call.1} parent=35 // pred_check_branch
          %204 = sbr.rel (%p202) target = $region40
        $region39: #{tpu_custom_call.1} parent=35 // pred_region
          %s205 = sand.u32 %s69, 1
          %s206 = scalar_lea.sflag [#allocation4], %s205
          %s207 = sand.u32 %s69, 1
          %s208 = smul.addr %s207, 8
          %s209 = scalar_lea.vmem [#allocation5], %s208
          %211 = dma.done %s206, 128
        $region40: #{tpu_custom_call.1} parent=35 // pred_fallthru
          _
      $region36: #{tpu_custom_call.1} parent=5 // pred_fallthru
        _
    $region6: #{tpu_custom_call.1} parent=1 // loop_footer
      %s17 = sadd.s32 1, %s13
    $region7: #{tpu_custom_call.1} parent=1 // loop_footer_branch
      %12 = sbr.rel target = $region3
    $region8: #{tpu_custom_call.1} parent=1 // loop_exit
      _
    %212 = vsyncpa [#allocation3], 1
    %s213 = scalar_lea.sflag [#allocation3], 1
    %214 = vsyncpa %s213, 1
    %215 = vsyncpa [#allocation4], 1
    %s216 = scalar_lea.sflag [#allocation4], 1
    %217 = vsyncpa %s216, 1

</llo_original>
